<compile_context>
chip_gen: v6e
topology: v6e:2x2x1
jax: 0.10.0
libtpu: 0.0.40
codegen_flags: <defaults>
</compile_context>

<pallas_src>
import jax
import jax.numpy as jnp
import numpy as np
from jax import lax
from jax.experimental import pallas as pl
from jax.experimental.pallas import tpu as pltpu


def global_attention_kernel(x_ref, batch_ref, w_ref, out_ref, gate_ref):
    x = x_ref[...]                                    # [N, F] f32
    N, F = x.shape
    G, C = out_ref.shape

    # --- fused gate_nn + nn (+ bias row): one MXU matmul -> [N, C+G] ---
    w = w_ref[...]                                    # [F+1, C+G]
    hf = jnp.dot(x, w[:F, :], preferred_element_type=jnp.float32) + w[F:, :]
    h = hf[:, :C]                                     # [N, C]
    glog = hf[:, C:]                                  # [N, G] gate logits (replicated cols)

    # --- boolean segment mask (node n belongs to graph g), computed once ---
    seg = lax.broadcasted_iota(jnp.int32, (N, G), 1)
    mask = batch_ref[...] == seg                      # [N, G] bool
    # Out-of-range batch ids -> all-false row -> node contributes 0 (scatter
    # semantics); the module contract is ids in [0, G).

    # --- segment softmax, dense masked form (PyG semantics, empty graphs -> 0) ---
    neg_inf = jnp.float32(-1e30)                      # finite: avoids 0*inf NaNs
    masked = jnp.where(mask, glog, neg_inf)           # [N, G]
    seg_max = jnp.max(masked, axis=0, keepdims=True)  # [1, G]
    # exp of the *masked* logits: cross-graph entries underflow to 0 (no inf);
    # empty-graph columns (seg_max = -1e30 -> exp(0) = 1) are zeroed by the where.
    p = jnp.where(mask, jnp.exp(masked - seg_max), 0.0)   # [N, G]
    seg_sum = jnp.sum(p, axis=0, keepdims=True)       # [1, G]
    inv = pl.reciprocal(seg_sum + jnp.float32(1e-16)) # exact recip (approx=True if tol relaxed)
    gnm = p * inv                                     # [N, G] == onehot * gate_norm

    # --- scatter_add(gate * h, batch): contract over N, no explicit transpose ---
    out_ref[...] = lax.dot_general(
        gnm, h, dimension_numbers=(((0,), (0,)), ((), ())),
        preferred_element_type=jnp.float32)           # [G, C]

    # --- lane-dense per-node gate: [1, N] row == ones_1G @ gnm^T (MXU, exact) ---
    ones_1g = jnp.ones((1, G), dtype=jnp.float32)
    gate_ref[...] = lax.dot_general(
        ones_1g, gnm, dimension_numbers=(((1,), (1,)), ((), ())),
        preferred_element_type=jnp.float32)           # [1, N]


def fuse_global_attention_params(wg, bg, wn, bn, size):
    """Build the fused [F+1, C+G] parameter ONCE at init (hoisted off the call path).

    Columns [0:C]   : nn weight.
    Columns [C:C+G] : gate weight replicated G times (so hf[:, C:] is directly the
                      dense [N, G] gate-logits matrix used by the segment softmax).
    Last row        : fused bias (bias add folded next to the matmul in-kernel).
    """
    w = jnp.concatenate([wn, jnp.tile(wg, (1, size))], axis=1)    # [F, C+G]
    b = jnp.concatenate([bn, jnp.tile(bg, (1, size))], axis=1)    # [1, C+G]
    return jnp.concatenate([w, b], axis=0).astype(jnp.float32)    # [F+1, C+G]


def global_attention(x, batch, w_fused, size):
    """x: [N, F] f32; batch: [N] int32 (graph ids in [0, size)); w_fused: [F+1, C+size]."""
    N, F = x.shape
    C = w_fused.shape[1] - size
    batch2d = batch.reshape(N, 1).astype(jnp.int32)

    vmem = pl.BlockSpec(memory_space=pltpu.MemorySpace.VMEM)
    out, gate_row = pl.pallas_call(
        global_attention_kernel,
        out_shape=(
            jax.ShapeDtypeStruct((size, C), jnp.float32),
            jax.ShapeDtypeStruct((1, N), jnp.float32),    # lane-dense gate row
        ),
        in_specs=[vmem, vmem, vmem],
        out_specs=(vmem, vmem),
    )(x, batch2d, w_fused)
    return out, gate_row.reshape(N, 1)


def reference(x, batch, wg, bg, wn, bn, size):
    gate = x @ wg + bg                              # [N, 1]
    h = x @ wn + bn                                 # [N, C]
    seg_max = jax.ops.segment_max(gate, batch, num_segments=size)       # [G, 1]
    gate = gate - seg_max[batch]
    e = jnp.exp(gate)
    seg_sum = jax.ops.segment_sum(e, batch, num_segments=size)          # [G, 1]
    gate = e / (seg_sum[batch] + 1e-16)
    out = jax.ops.segment_sum(gate * h, batch, num_segments=size)       # [G, C]
    return out, gate


if __name__ == "__main__":
    key = jax.random.PRNGKey(0)
    N, F, C, G = 64, 32, 32, 8     # nodes, in_channels, out_channels, num graphs

    k1, k2, k3, k4, k5 = jax.random.split(key, 5)
    x = jax.random.normal(k1, (N, F), dtype=jnp.float32)
    # sorted graph assignment, 8 nodes per graph
    batch = jnp.repeat(jnp.arange(G, dtype=jnp.int32), N // G)

    # deterministic "Linear" params (synthetic, not a checkpoint load)
    wg = jax.random.normal(k2, (F, 1), dtype=jnp.float32) / jnp.sqrt(F)
    bg = jax.random.normal(k3, (1, 1), dtype=jnp.float32) * 0.1
    wn = jax.random.normal(k4, (F, C), dtype=jnp.float32) / jnp.sqrt(F)
    bn = jax.random.normal(k5, (1, C), dtype=jnp.float32) * 0.1

    # Parameter fusion is done once, off the per-call path.
    w_fused = jax.block_until_ready(fuse_global_attention_params(wg, bg, wn, bn, size=G))

    out, gate = global_attention(x, batch, w_fused, size=G)
    jax.block_until_ready((out, gate))

    out_ref, gate_ref = reference(x, batch, wg, bg, wn, bn, size=G)
    np.testing.assert_allclose(np.asarray(out), np.asarray(out_ref), rtol=1e-5, atol=1e-5)
    np.testing.assert_allclose(np.asarray(gate), np.asarray(gate_ref), rtol=1e-5, atol=1e-5)

    print("KERNEL_OK")
</pallas_src>

<mosaic_0001>
module attributes {stable_mosaic.version = 11 : i64} {
  func.func @global_attention_kernel(%arg0: memref<64x32xf32, #tpu.memory_space<vmem>>, %arg1: memref<64x1xi32, #tpu.memory_space<vmem>>, %arg2: memref<33x40xf32, #tpu.memory_space<vmem>>, %arg3: memref<8x32xf32, #tpu.memory_space<vmem>>, %arg4: memref<1x64xf32, #tpu.memory_space<vmem>>) attributes {dimension_semantics = [], scalar_prefetch = 0 : i64, scratch_operands = 0 : i64, tpu.core_type = #tpu.core_type<tc>} {
    %c0 = arith.constant 0 : index
    %c0_0 = arith.constant 0 : index
    %0 = vector.load %arg0[%c0, %c0_0] : memref<64x32xf32, #tpu.memory_space<vmem>>, vector<64x32xf32>
    %c0_1 = arith.constant 0 : index
    %c0_2 = arith.constant 0 : index
    %1 = vector.load %arg2[%c0_1, %c0_2] : memref<33x40xf32, #tpu.memory_space<vmem>>, vector<33x40xf32>
    %2 = vector.extract_strided_slice %1 {offsets = [0, 0], sizes = [32, 40], strides = [1, 1]} : vector<33x40xf32> to vector<32x40xf32>
    %cst = arith.constant dense<0.000000e+00> : vector<64x40xf32>
    %3 = tpu.matmul %0, %2, %cst {dimension_numbers = #tpu.dot_dimension_numbers<[1], [0], [0], [1], [0, 0, 1, 1], [], []>} : vector<64x32xf32>, vector<32x40xf32>, vector<64x40xf32> -> vector<64x40xf32>
    %4 = vector.extract_strided_slice %1 {offsets = [32, 0], sizes = [1, 40], strides = [1, 1]} : vector<33x40xf32> to vector<1x40xf32>
    %5 = vector.broadcast %4 : vector<1x40xf32> to vector<64x40xf32>
    %6 = arith.addf %3, %5 : vector<64x40xf32>
    %7 = vector.extract_strided_slice %6 {offsets = [0, 0], sizes = [64, 32], strides = [1, 1]} : vector<64x40xf32> to vector<64x32xf32>
    %8 = vector.extract_strided_slice %6 {offsets = [0, 32], sizes = [64, 8], strides = [1, 1]} : vector<64x40xf32> to vector<64x8xf32>
    %9 = tpu.iota {dimensions = array<i32: 1>} : vector<64x8xi32>
    %c0_3 = arith.constant 0 : index
    %c0_4 = arith.constant 0 : index
    %10 = vector.load %arg1[%c0_3, %c0_4] : memref<64x1xi32, #tpu.memory_space<vmem>>, vector<64x1xi32>
    %11 = vector.broadcast %10 : vector<64x1xi32> to vector<64x8xi32>
    %12 = arith.cmpi eq, %11, %9 : vector<64x8xi32>
    %cst_5 = arith.constant -1.000000e+30 : f32
    %13 = vector.broadcast %cst_5 : f32 to vector<64x8xf32>
    %14 = arith.select %12, %8, %13 : vector<64x8xi1>, vector<64x8xf32>
    %cst_6 = arith.constant dense<0xFF800000> : vector<8xf32>
    %15 = vector.multi_reduction <maximumf>, %14, %cst_6 [0] : vector<64x8xf32> to vector<8xf32>
    %16 = vector.shape_cast %15 : vector<8xf32> to vector<1x8xf32>
    %17 = vector.broadcast %16 : vector<1x8xf32> to vector<64x8xf32>
    %18 = arith.subf %14, %17 : vector<64x8xf32>
    %19 = math.exp %18 : vector<64x8xf32>
    %cst_7 = arith.constant 0.000000e+00 : f32
    %20 = vector.broadcast %cst_7 : f32 to vector<64x8xf32>
    %21 = arith.select %12, %19, %20 : vector<64x8xi1>, vector<64x8xf32>
    %cst_8 = arith.constant dense<0.000000e+00> : vector<8xf32>
    %22 = vector.multi_reduction <add>, %21, %cst_8 [0] : vector<64x8xf32> to vector<8xf32>
    %23 = vector.shape_cast %22 : vector<8xf32> to vector<1x8xf32>
    %cst_9 = arith.constant 1.000000e-16 : f32
    %24 = vector.broadcast %cst_9 : f32 to vector<1x8xf32>
    %25 = arith.addf %23, %24 : vector<1x8xf32>
    %26 = tpu.reciprocal %25 : vector<1x8xf32> -> vector<1x8xf32>
    %27 = vector.broadcast %26 : vector<1x8xf32> to vector<64x8xf32>
    %28 = arith.mulf %21, %27 : vector<64x8xf32>
    %cst_10 = arith.constant dense<0.000000e+00> : vector<8x32xf32>
    %29 = tpu.matmul %28, %7, %cst_10 {dimension_numbers = #tpu.dot_dimension_numbers<[0], [0], [1], [1], [0, 1, 1, 1], [], []>} : vector<64x8xf32>, vector<64x32xf32>, vector<8x32xf32> -> vector<8x32xf32>
    %c0_11 = arith.constant 0 : index
    %c0_12 = arith.constant 0 : index
    %30 = vector.load %arg3[%c0_11, %c0_12] : memref<8x32xf32, #tpu.memory_space<vmem>>, vector<8x32xf32>
    tpu.vector_store %arg3[%c0_11, %c0_12], %29 {strides = array<i32>} : memref<8x32xf32, #tpu.memory_space<vmem>>, vector<8x32xf32>,
    %cst_13 = arith.constant 1.000000e+00 : f32
    %31 = vector.broadcast %cst_13 : f32 to vector<1x8xf32>
    %cst_14 = arith.constant dense<0.000000e+00> : vector<1x64xf32>
    %32 = tpu.matmul %31, %28, %cst_14 {dimension_numbers = #tpu.dot_dimension_numbers<[1], [1], [0], [0], [0, 0, 1, 0], [], []>} : vector<1x8xf32>, vector<64x8xf32>, vector<1x64xf32> -> vector<1x64xf32>
    %c0_15 = arith.constant 0 : index
    %c0_16 = arith.constant 0 : index
    %33 = vector.load %arg4[%c0_15, %c0_16] : memref<1x64xf32, #tpu.memory_space<vmem>>, vector<1x64xf32>
    tpu.vector_store %arg4[%c0_15, %c0_16], %32 {strides = array<i32>} : memref<1x64xf32, #tpu.memory_space<vmem>>, vector<1x64xf32>,
    return
  }
}

</mosaic_0001>

<llo_original>
// kernel: tpu_custom_call.1
$region0: #{tpu_custom_call.1}
  #allocation0 [shape = 'u32[]', space=smem, size = 0x4, offset = 0x4, fixed_abs, tag = 'smem constant byte address 0x4 - core index']
  #allocation1 [shape = 'u32[144,128]{1,0:T(1,128)}', space=vmem, size = 0x12000, scoped, tag = 'internal scratch']
  %s0 = inlined_call_operand.vmem [shape: f32[64,32], index: 0, kind: input, shape index: {}]
  %s1 = inlined_call_operand.vmem [shape: s32[64,1], index: 1, kind: input, shape index: {}]
  %s2 = inlined_call_operand.vmem [shape: f32[33,40], index: 2, kind: input, shape index: {}]
  %s3 = inlined_call_operand.hbm [shape: f32[8,32], index: 3, kind: output, shape index: {0}]
  %s4 = inlined_call_operand.hbm [shape: f32[1,64], index: 4, kind: output, shape index: {1}]
  %5 = xla_tuple %s3, %s4
  %s6 = sld [smem:[#allocation0]]
  $region30: #{tpu_custom_call.1} parent=0
    _
  %s8 = ssub.s32 1, %s6
  %s9 = scalar_select 0, %s8, %s6
  $region1: #{tpu_custom_call.1} parent=0
    #allocation2 [shape = 'u8[4096]{0}', space=vmem, size = 0x1000, scoped, tag = 'output window, operand 0, single buffered']
    #allocation3 [shape = 's32[1]{0}', space=sflag, size = 0x4, scoped, tag = 'scoped memory for tpu_custom_call.1']
    #allocation4 [shape = 'u8[512]{0}', space=vmem, size = 0x400, scoped, tag = 'output window, operand 1, single buffered']
    #allocation5 [shape = 's32[1]{0}', space=sflag, size = 0x4, scoped, tag = 'scoped memory for tpu_custom_call.1']
    %10 = vsyncpa [#allocation3], 0
    %11 = vsyncpa [#allocation5], 0
    // Predicated region
    $region2: #{tpu_custom_call.1} parent=1 // pred_check
      _
    $region3: #{tpu_custom_call.1} parent=1 // pred_check_branch
      %13 = sbr.rel (0) target = $region5
    $region4: #{tpu_custom_call.1} parent=1 // pred_region
      _
    $region5: #{tpu_custom_call.1} parent=1 // pred_fallthru
      _
    // Predicated region
    $region6: #{tpu_custom_call.1} parent=1 // pred_check
      _
    $region7: #{tpu_custom_call.1} parent=1 // pred_check_branch
      %15 = sbr.rel (0) target = $region9
    $region8: #{tpu_custom_call.1} parent=1 // pred_region
      _
    $region9: #{tpu_custom_call.1} parent=1 // pred_fallthru
      _
    // Predicated region
    $region10: #{tpu_custom_call.1} parent=1 // pred_check
      _
    $region11: #{tpu_custom_call.1} parent=1 // pred_check_branch
      %17 = sbr.rel (0) target = $region13
    $region12: #{tpu_custom_call.1} parent=1 // pred_region
      _
    $region13: #{tpu_custom_call.1} parent=1 // pred_fallthru
      _
    %v18 = vld [vmem:[%s0] sm:$0xff]
    %v19 = vld [vmem:[%s0 + $0x8] sm:$0xff]
    %v20 = vld [vmem:[%s0 + $0x10] sm:$0xff]
    %v21 = vld [vmem:[%s0 + $0x18] sm:$0xff]
    %v22 = vld [vmem:[%s0 + $0x20] sm:$0xff]
    %v23 = vld [vmem:[%s0 + $0x28] sm:$0xff]
    %v24 = vld [vmem:[%s0 + $0x30] sm:$0xff]
    %v25 = vld [vmem:[%s0 + $0x38] sm:$0xff]
    %v26 = vld [vmem:[%s2] sm:$0xff]
    %v27 = vld [vmem:[%s2 + $0x8] sm:$0xff]
    %v28 = vld [vmem:[%s2 + $0x10] sm:$0xff]
    %v29 = vld [vmem:[%s2 + $0x18] sm:$0xff]
    %v30 = vld [vmem:[%s2 + $0x20] sm:$0x1]
    %v31 = vlaneseq
    %v32 = vshrl.u32 %v31, 7
    %v33 = vsub.s32 0, %v32
    %v34 = vrot.slane %v30, %v33
    %vm35 = vcmask 261120
    %v37 = vsel %vm35, %v18, 0
    %v40 = vsel %vm35, %v19, 0
    %v43 = vsel %vm35, %v20, 0
    %v46 = vsel %vm35, %v21, 0
    %v49 = vsel %vm35, %v22, 0
    %v52 = vsel %vm35, %v23, 0
    %v55 = vsel %vm35, %v24, 0
    %v58 = vsel %vm35, %v25, 0
    %60 = vmatprep.subr.mxu0 0.0
    %61 = vmatpush1.msra.mxu0 0.0
    %62 = vmatprep.subr.mxu0 0.0
    %63 = vmatpush1.msra.mxu0 0.0
    %64 = vmatprep.subr.mxu0 0.0
    %65 = vmatpush1.msra.mxu0 0.0
    %66 = vmatprep.subr.mxu0 0.0
    %67 = vmatpush1.msra.mxu0 0.0
    %68 = vmatprep.subr.mxu0 0.0
    %69 = vmatpush1.msra.mxu0 0.0
    %70 = vmatprep.subr.mxu0 0.0
    %71 = vmatpush1.msra.mxu0 0.0
    %72 = vmatprep.subr.mxu0 0.0
    %73 = vmatpush1.msra.mxu0 0.0
    %74 = vmatprep.subr.mxu0 0.0
    %75 = vmatpush1.msra.mxu0 0.0
    %76 = vmatprep.subr.mxu0 0.0
    %77 = vmatpush1.msra.mxu0 0.0
    %78 = vmatprep.subr.mxu0 0.0
    %79 = vmatpush1.msra.mxu0 0.0
    %80 = vmatprep.subr.mxu0 0.0
    %81 = vmatpush1.msra.mxu0 0.0
    %82 = vmatprep.subr.mxu0 0.0
    %83 = vmatpush1.msra.mxu0 0.0
    %84 = vmatprep.subr.mxu0 0.0
    %85 = vmatpush1.msra.mxu0 %v29
    %86 = vmatprep.subr.mxu0 0.0
    %87 = vmatpush1.msra.mxu0 %v28
    %88 = vmatprep.subr.mxu0 0.0
    %89 = vmatpush1.msra.mxu0 %v27
    %90 = vmatprep.subr.mxu0 0.0
    %91 = vmatpush1.msra.mxu0 %v26
    %92 = vmatprep.subr.mxu0 0.0
    %93 = vmatpush2.msra.mxu0 0.0
    %94 = vmatprep.subr.mxu0 0.0
    %95 = vmatpush2.msra.mxu0 0.0
    %96 = vmatprep.subr.mxu0 0.0
    %97 = vmatpush2.msra.mxu0 0.0
    %98 = vmatprep.subr.mxu0 0.0
    %99 = vmatpush2.msra.mxu0 0.0
    %100 = vmatprep.subr.mxu0 0.0
    %101 = vmatpush2.msra.mxu0 0.0
    %102 = vmatprep.subr.mxu0 0.0
    %103 = vmatpush2.msra.mxu0 0.0
    %104 = vmatprep.subr.mxu0 0.0
    %105 = vmatpush2.msra.mxu0 0.0
    %106 = vmatprep.subr.mxu0 0.0
    %107 = vmatpush2.msra.mxu0 0.0
    %108 = vmatprep.subr.mxu0 0.0
    %109 = vmatpush2.msra.mxu0 0.0
    %110 = vmatprep.subr.mxu0 0.0
    %111 = vmatpush2.msra.mxu0 0.0
    %112 = vmatprep.subr.mxu0 0.0
    %113 = vmatpush2.msra.mxu0 0.0
    %114 = vmatprep.subr.mxu0 0.0
    %115 = vmatpush2.msra.mxu0 0.0
    %116 = vmatprep.subr.mxu0 0.0
    %117 = vmatpush2.msra.mxu0 0.0
    %118 = vmatprep.subr.mxu0 0.0
    %119 = vmatpush2.msra.mxu0 0.0
    %120 = vmatprep.subr.mxu0 0.0
    %121 = vmatpush2.msra.mxu0 0.0
    %122 = vmatprep.subr.mxu0 0.0
    %123 = vmatpush2.msra.mxu0 0.0
    %124 = vmatprep.mubr.f32.mxu0 0.0
    %125 = vmatmul.mubr.f32.gmra.mxu0 %v37
    %v126 = vpop.f32.mrf.mxu0
    %v127 = vadd.f32 %v34, %v126
    %v128 = vpop.f32.mrf.mxu0
    %129 = vmatprep.mubr.f32.mxu0 0.0
    %130 = vmatmul.mubr.f32.gmra.mxu0 %v40
    %v131 = vpop.f32.mrf.mxu0
    %v132 = vadd.f32 %v34, %v131
    %v133 = vpop.f32.mrf.mxu0
    %134 = vmatprep.mubr.f32.mxu0 0.0
    %135 = vmatmul.mubr.f32.gmra.mxu0 %v43
    %v136 = vpop.f32.mrf.mxu0
    %v137 = vadd.f32 %v34, %v136
    %v138 = vpop.f32.mrf.mxu0
    %139 = vmatprep.mubr.f32.mxu0 0.0
    %140 = vmatmul.mubr.f32.gmra.mxu0 %v46
    %v141 = vpop.f32.mrf.mxu0
    %v142 = vadd.f32 %v34, %v141
    %v143 = vpop.f32.mrf.mxu0
    %144 = vmatprep.mubr.f32.mxu0 0.0
    %145 = vmatmul.mubr.f32.gmra.mxu0 %v49
    %v146 = vpop.f32.mrf.mxu0
    %v147 = vadd.f32 %v34, %v146
    %v148 = vpop.f32.mrf.mxu0
    %149 = vmatprep.mubr.f32.mxu0 0.0
    %150 = vmatmul.mubr.f32.gmra.mxu0 %v52
    %v151 = vpop.f32.mrf.mxu0
    %v152 = vadd.f32 %v34, %v151
    %v153 = vpop.f32.mrf.mxu0
    %154 = vmatprep.mubr.f32.mxu0 0.0
    %155 = vmatmul.mubr.f32.gmra.mxu0 %v55
    %v156 = vpop.f32.mrf.mxu0
    %v157 = vadd.f32 %v34, %v156
    %v158 = vpop.f32.mrf.mxu0
    %159 = vmatprep.mubr.f32.mxu0 0.0
    %160 = vmatmul.mubr.f32.gmra.mxu0 %v58
    %v161 = vpop.f32.mrf.mxu0
    %v162 = vadd.f32 %v34, %v161
    %v163 = vpop.f32.mrf.mxu0
    %164 = vdwg.mxu0
    %v165 = vlaneseq
    %v166 = vand.u32 %v165, 127
    %v167 = vld [vmem:[%s1] sm:$0xff]
    %v168 = vld [vmem:[%s1 + $0x8] sm:$0xff]
    %v169 = vld [vmem:[%s1 + $0x10] sm:$0xff]
    %v170 = vld [vmem:[%s1 + $0x18] sm:$0xff]
    %v171 = vld [vmem:[%s1 + $0x20] sm:$0xff]
    %v172 = vld [vmem:[%s1 + $0x28] sm:$0xff]
    %v173 = vld [vmem:[%s1 + $0x30] sm:$0xff]
    %v174 = vld [vmem:[%s1 + $0x38] sm:$0xff]
    %175 = vset.pattern.permute.xlu0 0
    %176 = vperm.xlu0 %175, %v167
    %v177 = vpop.permute.xlu0 %176
    %178 = vset.pattern.permute.xlu0 0
    %179 = vperm.xlu0 %178, %v168
    %v180 = vpop.permute.xlu0 %179
    %181 = vset.pattern.permute.xlu0 0
    %182 = vperm.xlu0 %181, %v169
    %v183 = vpop.permute.xlu0 %182
    %184 = vset.pattern.permute.xlu0 0
    %185 = vperm.xlu0 %184, %v170
    %v186 = vpop.permute.xlu0 %185
    %187 = vset.pattern.permute.xlu0 0
    %188 = vperm.xlu0 %187, %v171
    %v189 = vpop.permute.xlu0 %188
    %190 = vset.pattern.permute.xlu0 0
    %191 = vperm.xlu0 %190, %v172
    %v192 = vpop.permute.xlu0 %191
    %193 = vset.pattern.permute.xlu0 0
    %194 = vperm.xlu0 %193, %v173
    %v195 = vpop.permute.xlu0 %194
    %196 = vset.pattern.permute.xlu0 0
    %197 = vperm.xlu0 %196, %v174
    %v198 = vpop.permute.xlu0 %197
    %vm199 = vcmp.eq.s32.totalorder %v177, %v166
    %vm200 = vcmp.eq.s32.totalorder %v180, %v166
    %vm201 = vcmp.eq.s32.totalorder %v183, %v166
    %vm202 = vcmp.eq.s32.totalorder %v186, %v166
    %vm203 = vcmp.eq.s32.totalorder %v189, %v166
    %vm204 = vcmp.eq.s32.totalorder %v192, %v166
    %vm205 = vcmp.eq.s32.totalorder %v195, %v166
    %vm206 = vcmp.eq.s32.totalorder %v198, %v166
    %215 = vrot.lane.b32.xlu0 %v127, 96
    %v216 = vpop.permute.xlu0 %215
    %217 = vrot.lane.b32.xlu0 %v132, 96
    %v218 = vpop.permute.xlu0 %217
    %219 = vrot.lane.b32.xlu0 %v137, 96
    %v220 = vpop.permute.xlu0 %219
    %221 = vrot.lane.b32.xlu0 %v142, 96
    %v222 = vpop.permute.xlu0 %221
    %223 = vrot.lane.b32.xlu0 %v147, 96
    %v224 = vpop.permute.xlu0 %223
    %225 = vrot.lane.b32.xlu0 %v152, 96
    %v226 = vpop.permute.xlu0 %225
    %227 = vrot.lane.b32.xlu0 %v157, 96
    %v228 = vpop.permute.xlu0 %227
    %229 = vrot.lane.b32.xlu0 %v162, 96
    %v230 = vpop.permute.xlu0 %229
    %v239 = vsel %vm199, %v216, -1e+30
    %v240 = vsel %vm200, %v218, -1e+30
    %v241 = vsel %vm201, %v220, -1e+30
    %v242 = vsel %vm202, %v222, -1e+30
    %v243 = vsel %vm203, %v224, -1e+30
    %v244 = vsel %vm204, %v226, -1e+30
    %v245 = vsel %vm205, %v228, -1e+30
    %v246 = vsel %vm206, %v230, -1e+30
    %vm247 = vcmask 64512
    %v248 = vsel %vm247, %v239, -inf
    %v249 = vsel %vm247, %v240, -inf
    %v250 = vsel %vm247, %v241, -inf
    %v251 = vsel %vm247, %v242, -inf
    %v252 = vsel %vm247, %v243, -inf
    %v253 = vmax.f32 %v248, %v252
    %v254 = vsel %vm247, %v244, -inf
    %v255 = vmax.f32 %v249, %v254
    %v256 = vsel %vm247, %v245, -inf
    %v257 = vmax.f32 %v250, %v256
    %v258 = vsel %vm247, %v246, -inf
    %v259 = vmax.f32 %v251, %v258
    %v260 = vmax.f32 %v253, %v255
    %v261 = vmax.f32 %v257, %v259
    %v262 = vmax.f32 %v260, %v261
    %v263 = vrot.slane %v262, 4
    %v264 = vmax.f32 %v262, %v263
    %v265 = vrot.slane %v264, 2
    %v266 = vmax.f32 %v264, %v265
    %v267 = vrot.slane %v266, 1
    %v268 = vmax.f32 %v266, %v267
    %v269 = vsub.f32 %v239, %v268
    %v270 = vsub.f32 %v240, %v268
    %v271 = vsub.f32 %v241, %v268
    %v272 = vsub.f32 %v242, %v268
    %v273 = vsub.f32 %v243, %v268
    %v274 = vsub.f32 %v244, %v268
    %v275 = vsub.f32 %v245, %v268
    %v276 = vsub.f32 %v246, %v268
    %v277 = vmul.f32 %v269, 1.442695
    %v278 = vpow.pop %v277
    %v279 = vmul.f32 %v270, 1.442695
    %v280 = vpow.pop %v279
    %v281 = vmul.f32 %v271, 1.442695
    %v282 = vpow.pop %v281
    %v283 = vmul.f32 %v272, 1.442695
    %v284 = vpow.pop %v283
    %v285 = vmul.f32 %v273, 1.442695
    %v286 = vpow.pop %v285
    %v287 = vmul.f32 %v274, 1.442695
    %v288 = vpow.pop %v287
    %v289 = vmul.f32 %v275, 1.442695
    %v290 = vpow.pop %v289
    %v291 = vmul.f32 %v276, 1.442695
    %v292 = vpow.pop %v291
    %v293 = vsel %vm199, %v278, 0.0
    %v294 = vsel %vm200, %v280, 0.0
    %v295 = vsel %vm201, %v282, 0.0
    %v296 = vsel %vm202, %v284, 0.0
    %v297 = vsel %vm203, %v286, 0.0
    %v298 = vsel %vm204, %v288, 0.0
    %v299 = vsel %vm205, %v290, 0.0
    %v300 = vsel %vm206, %v292, 0.0
    %v301 = vsel %vm247, %v293, 0.0
    %v302 = vsel %vm247, %v294, 0.0
    %v303 = vadd.f32 %v301, %v302
    %v304 = vsel %vm247, %v295, 0.0
    %v305 = vadd.f32 %v303, %v304
    %v306 = vsel %vm247, %v296, 0.0
    %v307 = vadd.f32 %v305, %v306
    %v308 = vsel %vm247, %v297, 0.0
    %v309 = vadd.f32 %v307, %v308
    %v310 = vsel %vm247, %v298, 0.0
    %v311 = vadd.f32 %v309, %v310
    %v312 = vsel %vm247, %v299, 0.0
    %v313 = vadd.f32 %v311, %v312
    %v314 = vsel %vm247, %v300, 0.0
    %v315 = vadd.f32 %v313, %v314
    %v316 = vrot.slane %v315, 4
    %v317 = vadd.f32 %v315, %v316
    %v318 = vrot.slane %v317, 2
    %v319 = vadd.f32 %v317, %v318
    %v320 = vrot.slane %v319, 1
    %v321 = vadd.f32 %v319, %v320
    %v322 = vadd.f32 %v321, 1e-16
    %v323 = vrcp.pop %v322
    %v324 = vmul.f32 %v293, %v323
    %v325 = vmul.f32 %v294, %v323
    %v326 = vmul.f32 %v295, %v323
    %v327 = vmul.f32 %v296, %v323
    %v328 = vmul.f32 %v297, %v323
    %v329 = vmul.f32 %v298, %v323
    %v330 = vmul.f32 %v299, %v323
    %v331 = vmul.f32 %v300, %v323
    %332 = vxpose.xlu0.b32.start [1/16] %v324, 128
    %333 = vxpose.xlu0.b32.cont [2/16] %v325, 128
    %334 = vxpose.xlu0.b32.cont [3/16] %v326, 128
    %335 = vxpose.xlu0.b32.cont [4/16] %v327, 128
    %336 = vxpose.xlu0.b32.cont [5/16] %v328, 128
    %337 = vxpose.xlu0.b32.cont [6/16] %v329, 128
    %338 = vxpose.xlu0.b32.cont [7/16] %v330, 128
    %339 = vxpose.xlu0.b32.cont [8/16] %v331, 128
    %340 = vxpose.xlu0.b32.cont [9/16] 0.0, 128
    %341 = vxpose.xlu0.b32.cont [10/16] 0.0, 128
    %342 = vxpose.xlu0.b32.cont [11/16] 0.0, 128
    %343 = vxpose.xlu0.b32.cont [12/16] 0.0, 128
    %344 = vxpose.xlu0.b32.cont [13/16] 0.0, 128
    %345 = vxpose.xlu0.b32.cont [14/16] 0.0, 128
    %346 = vxpose.xlu0.b32.cont [15/16] 0.0, 128
    %347 = vxpose.xlu0.b32.end [16/16] 0.0, 128
    %v348 = vpop.trf.xlu0
    %v349 = vpop.trf.xlu0
    %v350 = vpop.trf.xlu0
    %v351 = vpop.trf.xlu0
    %v352 = vpop.trf.xlu0
    %v353 = vpop.trf.xlu0
    %v354 = vpop.trf.xlu0
    %v355 = vpop.trf.xlu0
    %v356 = vpop.trf.xlu0
    %v357 = vpop.trf.xlu0
    %v358 = vpop.trf.xlu0
    %v359 = vpop.trf.xlu0
    %v360 = vpop.trf.xlu0
    %v361 = vpop.trf.xlu0
    %v362 = vpop.trf.xlu0
    %v363 = vpop.trf.xlu0
    %vm364 = vcmask 523264
    %v366 = vsel %vm364, %v348, 0
    %368 = vmatprep.subr.mxu0 0.0
    %369 = vmatpush1.msra.mxu0 0.0
    %370 = vmatprep.subr.mxu0 0.0
    %371 = vmatpush1.msra.mxu0 0.0
    %372 = vmatprep.subr.mxu0 0.0
    %373 = vmatpush1.msra.mxu0 0.0
    %374 = vmatprep.subr.mxu0 0.0
    %375 = vmatpush1.msra.mxu0 0.0
    %376 = vmatprep.subr.mxu0 0.0
    %377 = vmatpush1.msra.mxu0 0.0
    %378 = vmatprep.subr.mxu0 0.0
    %379 = vmatpush1.msra.mxu0 0.0
    %380 = vmatprep.subr.mxu0 0.0
    %381 = vmatpush1.msra.mxu0 0.0
    %382 = vmatprep.subr.mxu0 0.0
    %383 = vmatpush1.msra.mxu0 0.0
    %384 = vmatprep.subr.mxu0 0.0
    %385 = vmatpush1.msra.mxu0 %v162
    %386 = vmatprep.subr.mxu0 0.0
    %387 = vmatpush1.msra.mxu0 %v157
    %388 = vmatprep.subr.mxu0 0.0
    %389 = vmatpush1.msra.mxu0 %v152
    %390 = vmatprep.subr.mxu0 0.0
    %391 = vmatpush1.msra.mxu0 %v147
    %392 = vmatprep.subr.mxu0 0.0
    %393 = vmatpush1.msra.mxu0 %v142
    %394 = vmatprep.subr.mxu0 0.0
    %395 = vmatpush1.msra.mxu0 %v137
    %396 = vmatprep.subr.mxu0 0.0
    %397 = vmatpush1.msra.mxu0 %v132
    %398 = vmatprep.subr.mxu0 0.0
    %399 = vmatpush1.msra.mxu0 %v127
    %400 = vmatprep.subr.mxu0 0.0
    %401 = vmatpush2.msra.mxu0 0.0
    %402 = vmatprep.subr.mxu0 0.0
    %403 = vmatpush2.msra.mxu0 0.0
    %404 = vmatprep.subr.mxu0 0.0
    %405 = vmatpush2.msra.mxu0 0.0
    %406 = vmatprep.subr.mxu0 0.0
    %407 = vmatpush2.msra.mxu0 0.0
    %408 = vmatprep.subr.mxu0 0.0
    %409 = vmatpush2.msra.mxu0 0.0
    %410 = vmatprep.subr.mxu0 0.0
    %411 = vmatpush2.msra.mxu0 0.0
    %412 = vmatprep.subr.mxu0 0.0
    %413 = vmatpush2.msra.mxu0 0.0
    %414 = vmatprep.subr.mxu0 0.0
    %415 = vmatpush2.msra.mxu0 0.0
    %416 = vmatprep.subr.mxu0 0.0
    %417 = vmatpush2.msra.mxu0 0.0
    %418 = vmatprep.subr.mxu0 0.0
    %419 = vmatpush2.msra.mxu0 0.0
    %420 = vmatprep.subr.mxu0 0.0
    %421 = vmatpush2.msra.mxu0 0.0
    %422 = vmatprep.subr.mxu0 0.0
    %423 = vmatpush2.msra.mxu0 0.0
    %424 = vmatprep.subr.mxu0 0.0
    %425 = vmatpush2.msra.mxu0 0.0
    %426 = vmatprep.subr.mxu0 0.0
    %427 = vmatpush2.msra.mxu0 0.0
    %428 = vmatprep.subr.mxu0 0.0
    %429 = vmatpush2.msra.mxu0 0.0
    %430 = vmatprep.subr.mxu0 0.0
    %431 = vmatpush2.msra.mxu0 0.0
    %432 = vmatprep.mubr.f32.mxu0 0.0
    %433 = vmatmul.mubr.f32.gmra.mxu0 %v366
    %v434 = vpop.f32.mrf.mxu0
    %v435 = vadd.f32 0.0, %v434
    %v436 = vpop.f32.mrf.mxu0
    %437 = vdwg.mxu0
    %438 = vst.msk [vmem:[#allocation2] sm:$0xff] %vm35, %v435
    %v440 = vsel %vm247, 1.0, 0
    %v443 = vsel %vm247, %v324, 0
    %v446 = vsel %vm247, %v325, 0
    %v449 = vsel %vm247, %v326, 0
    %v452 = vsel %vm247, %v327, 0
    %v455 = vsel %vm247, %v328, 0
    %v458 = vsel %vm247, %v329, 0
    %v461 = vsel %vm247, %v330, 0
    %v464 = vsel %vm247, %v331, 0
    %466 = vmatprep.subr.mxu0 0.0
    %467 = vmatpush1.xpose.msra.mxu0 0.0
    %468 = vmatprep.subr.mxu0 0.0
    %469 = vmatpush1.xpose.msra.mxu0 0.0
    %470 = vmatprep.subr.mxu0 0.0
    %471 = vmatpush1.xpose.msra.mxu0 0.0
    %472 = vmatprep.subr.mxu0 0.0
    %473 = vmatpush1.xpose.msra.mxu0 0.0
    %474 = vmatprep.subr.mxu0 0.0
    %475 = vmatpush1.xpose.msra.mxu0 0.0
    %476 = vmatprep.subr.mxu0 0.0
    %477 = vmatpush1.xpose.msra.mxu0 0.0
    %478 = vmatprep.subr.mxu0 0.0
    %479 = vmatpush1.xpose.msra.mxu0 0.0
    %480 = vmatprep.subr.mxu0 0.0
    %481 = vmatpush1.xpose.msra.mxu0 0.0
    %482 = vmatprep.subr.mxu0 0.0
    %483 = vmatpush1.xpose.msra.mxu0 %v464
    %484 = vmatprep.subr.mxu0 0.0
    %485 = vmatpush1.xpose.msra.mxu0 %v461
    %486 = vmatprep.subr.mxu0 0.0
    %487 = vmatpush1.xpose.msra.mxu0 %v458
    %488 = vmatprep.subr.mxu0 0.0
    %489 = vmatpush1.xpose.msra.mxu0 %v455
    %490 = vmatprep.subr.mxu0 0.0
    %491 = vmatpush1.xpose.msra.mxu0 %v452
    %492 = vmatprep.subr.mxu0 0.0
    %493 = vmatpush1.xpose.msra.mxu0 %v449
    %494 = vmatprep.subr.mxu0 0.0
    %495 = vmatpush1.xpose.msra.mxu0 %v446
    %496 = vmatprep.subr.mxu0 0.0
    %497 = vmatpush1.xpose.msra.mxu0 %v443
    %498 = vmatprep.subr.mxu0 0.0
    %499 = vmatpush2.xpose.msra.mxu0 0.0
    %500 = vmatprep.subr.mxu0 0.0
    %501 = vmatpush2.xpose.msra.mxu0 0.0
    %502 = vmatprep.subr.mxu0 0.0
    %503 = vmatpush2.xpose.msra.mxu0 0.0
    %504 = vmatprep.subr.mxu0 0.0
    %505 = vmatpush2.xpose.msra.mxu0 0.0
    %506 = vmatprep.subr.mxu0 0.0
    %507 = vmatpush2.xpose.msra.mxu0 0.0
    %508 = vmatprep.subr.mxu0 0.0
    %509 = vmatpush2.xpose.msra.mxu0 0.0
    %510 = vmatprep.subr.mxu0 0.0
    %511 = vmatpush2.xpose.msra.mxu0 0.0
    %512 = vmatprep.subr.mxu0 0.0
    %513 = vmatpush2.xpose.msra.mxu0 0.0
    %514 = vmatprep.subr.mxu0 0.0
    %515 = vmatpush2.xpose.msra.mxu0 0.0
    %516 = vmatprep.subr.mxu0 0.0
    %517 = vmatpush2.xpose.msra.mxu0 0.0
    %518 = vmatprep.subr.mxu0 0.0
    %519 = vmatpush2.xpose.msra.mxu0 0.0
    %520 = vmatprep.subr.mxu0 0.0
    %521 = vmatpush2.xpose.msra.mxu0 0.0
    %522 = vmatprep.subr.mxu0 0.0
    %523 = vmatpush2.xpose.msra.mxu0 0.0
    %524 = vmatprep.subr.mxu0 0.0
    %525 = vmatpush2.xpose.msra.mxu0 0.0
    %526 = vmatprep.subr.mxu0 0.0
    %527 = vmatpush2.xpose.msra.mxu0 0.0
    %528 = vmatprep.subr.mxu0 0.0
    %529 = vmatpush2.xpose.msra.mxu0 0.0
    %530 = vmatprep.mubr.f32.mxu0 0.0
    %531 = vmatmul.mubr.f32.gmra.mxu0 %v440
    %v532 = vpop.f32.mrf.mxu0
    %v533 = vadd.f32 0.0, %v532
    %v534 = vpop.f32.mrf.mxu0
    %535 = vdwg.mxu0
    %vm536 = vcmask 516096
    %537 = vst.msk [vmem:[#allocation4] sm:$0x1] %vm536, %v533
    // Predicated region
    $region14: #{tpu_custom_call.1} parent=1 // pred_check
      _
    $region15: #{tpu_custom_call.1} parent=1 // pred_check_branch
      %539 = sbr.rel (0) target = $region17
    $region16: #{tpu_custom_call.1} parent=1 // pred_region
      %s541 = ssub.s32 128, 128
      %542 = vsyncadd [#allocation3], %s541
      %s544 = sshll.u32 [#allocation2], 4
      %s545 = int_to_ptr.vmem [resolvable:$true] %s544
      %547 = dma.vmem_to_hbm [thread:$0]  %s545, 128, %s3, [#allocation3]
    $region17: #{tpu_custom_call.1} parent=1 // pred_fallthru
      _
    // Predicated region
    $region18: #{tpu_custom_call.1} parent=1 // pred_check
      _
    $region19: #{tpu_custom_call.1} parent=1 // pred_check_branch
      %549 = sbr.rel (0) target = $region21
    $region20: #{tpu_custom_call.1} parent=1 // pred_region
      %s551 = ssub.s32 16, 16
      %552 = vsyncadd [#allocation5], %s551
      %s554 = sshll.u32 [#allocation4], 4
      %s555 = int_to_ptr.vmem [resolvable:$true] %s554
      %557 = dma.vmem_to_hbm [thread:$0]  %s555, 16, %s4, [#allocation5]
    $region21: #{tpu_custom_call.1} parent=1 // pred_fallthru
      _
    // Predicated region
    $region22: #{tpu_custom_call.1} parent=1 // pred_check
      _
    $region23: #{tpu_custom_call.1} parent=1 // pred_check_branch
      %559 = sbr.rel (0) target = $region25
    $region24: #{tpu_custom_call.1} parent=1 // pred_region
      %560 = dma.done [#allocation3], 128
    $region25: #{tpu_custom_call.1} parent=1 // pred_fallthru
      _
    // Predicated region
    $region26: #{tpu_custom_call.1} parent=1 // pred_check
      _
    $region27: #{tpu_custom_call.1} parent=1 // pred_check_branch
      %562 = sbr.rel (0) target = $region29
    $region28: #{tpu_custom_call.1} parent=1 // pred_region
      %563 = dma.done [#allocation5], 16
    $region29: #{tpu_custom_call.1} parent=1 // pred_fallthru
      _
    %564 = vsyncpa [#allocation3], 1
    %565 = vsyncpa [#allocation5], 1

</llo_original>
